<compile_context>
chip_gen: v7x
topology: tpu7x:2x2x1
jax: 0.10.0
libtpu: 0.0.40
codegen_flags: <defaults>
</compile_context>

<pallas_src>
import jax
import jax.numpy as jnp
from jax.experimental import pallas as pl
from jax.experimental.pallas import tpu as pltpu


_SMALL_PLANE_BYTES = 512 * 1024      # below this, batch-block instead of tiling the plane
_TARGET_TILE_BYTES = 2 * 1024 * 1024  # target DMA tile size for the batch-blocked path


def _transpose_plane_kernel(x_ref, o_ref):
    # x_ref: (tn, tc) input tile; o_ref: (tc, tn) output tile.
    o_ref[...] = x_ref[...].T


def _transpose_batched_kernel(x_ref, o_ref):
    # x_ref: (tb, N, C) block; o_ref: (tb, C, N) block.
    # .T on a 3-D block would reverse ALL axes — use swapaxes.
    o_ref[...] = jnp.swapaxes(x_ref[...], 1, 2)


def _round_up_128(v):
    return ((v + 127) // 128) * 128


def _max_tile_elems(itemsize):
    # Keep per-row contiguous DMA runs >= 2 KiB and per-tile <= ~4 MiB.
    if itemsize >= 4:
        return 1024   # f32: 4 KiB rows, 4 MiB tiles
    if itemsize == 2:
        return 1024   # bf16: 2 KiB rows, 2 MiB tiles
    return 2048       # int8/fp8: 2 KiB rows, 4 MiB tiles


def _pick_tile(dim, max_tile):
    """Balanced tile size for one plane dim.

    Full-extent blocks (== array dim) are exempt from the (8,128) rule.
    Otherwise split into the minimum number of tiles and balance them,
    rounded up to a multiple of 128 (legal in both lane/sublane orientations),
    so the remainder tile isn't a tiny masked tail (e.g. 577 -> 384+193,
    not 512+65).
    """
    if dim <= max_tile:
        return dim
    nsplit = -(-dim // max_tile)          # ceil
    t = _round_up_128(-(-dim // nsplit))  # balanced, 128-aligned
    return min(t, max_tile)


def _vmem_limit_bytes(tile_bytes):
    # in + out tiles, each double-buffered, plus headroom for internal scratch.
    # Kept <= 48 MiB so it always fits v7x's 64 MiB physical VMEM per TC.
    return int(min(48 << 20, max(32 << 20, 4 * tile_bytes + (8 << 20))))


def _transpose_last_two(x):
    """Swap the last two dims of `x` (arbitrary leading batch dims) with Pallas."""
    assert x.ndim >= 2
    *lead, N, C = x.shape
    Bc = 1
    for d in lead:
        Bc *= d
    x3 = x.reshape(Bc, N, C)

    itemsize = x.dtype.itemsize
    plane_bytes = N * C * itemsize
    cost = pl.CostEstimate(flops=0, transcendentals=0,
                           bytes_accessed=int(2 * x.size * itemsize))

    if plane_bytes < _SMALL_PLANE_BYTES:
        # --- Batch-blocked path: whole (N, C) planes, tb of them per grid step. ---
        tb = max(1, _TARGET_TILE_BYTES // max(plane_bytes, 1))
        nsteps = -(-Bc // tb)
        if Bc >= 2:
            nsteps = max(2, nsteps)   # keep both v7x TensorCores busy
        tb = -(-Bc // nsteps)
        tile_bytes = tb * plane_bytes

        out3 = pl.pallas_call(
            _transpose_batched_kernel,
            out_shape=jax.ShapeDtypeStruct((Bc, C, N), x.dtype),
            grid_spec=pltpu.PrefetchScalarGridSpec(
                num_scalar_prefetch=0,
                grid=(pl.cdiv(Bc, tb),),
                in_specs=[pl.BlockSpec((tb, N, C), lambda b: (b, 0, 0))],
                out_specs=pl.BlockSpec((tb, C, N), lambda b: (b, 0, 0)),
            ),
            compiler_params=pltpu.CompilerParams(
                dimension_semantics=("parallel",),
                vmem_limit_bytes=_vmem_limit_bytes(tile_bytes)),
            cost_estimate=cost,
        )(x3)
    else:
        # --- Plane-tiled path: large (N, C) planes, balanced 128-multiple tiles. ---
        max_tile = _max_tile_elems(itemsize)
        tn = _pick_tile(N, max_tile)
        tc = _pick_tile(C, max_tile)

        # v7x has 2 TensorCores: a (1,1,1) grid leaves one idle, so force a
        # 2-way split of the larger plane dim when the whole plane fit one tile.
        if Bc * pl.cdiv(N, tn) * pl.cdiv(C, tc) == 1:
            if N >= C and N > 128:
                tn = _round_up_128(-(-N // 2))
            elif C > 128:
                tc = _round_up_128(-(-C // 2))
        tile_bytes = tn * tc * itemsize

        out3 = pl.pallas_call(
            _transpose_plane_kernel,
            out_shape=jax.ShapeDtypeStruct((Bc, C, N), x.dtype),
            grid_spec=pltpu.PrefetchScalarGridSpec(
                num_scalar_prefetch=0,
                grid=(Bc, pl.cdiv(N, tn), pl.cdiv(C, tc)),
                in_specs=[
                    pl.BlockSpec((None, tn, tc), lambda b, i, j: (b, i, j)),
                ],
                out_specs=pl.BlockSpec((None, tc, tn), lambda b, i, j: (b, j, i)),
            ),
            compiler_params=pltpu.CompilerParams(
                dimension_semantics=("parallel", "parallel", "parallel"),
                vmem_limit_bytes=_vmem_limit_bytes(tile_bytes)),
            cost_estimate=cost,
        )(x3)

    return out3.reshape(*lead, C, N)


def transpose_module(x, dim0, dim1):
    """Pallas equivalent of x.transpose(dim0, dim1).contiguous()."""
    nd = x.ndim
    d0 = dim0 % nd
    d1 = dim1 % nd
    if d0 == d1:
        return x
    d0, d1 = (min(d0, d1), max(d0, d1))
    if (d0, d1) == (nd - 2, nd - 1):
        return _transpose_last_two(x)
    # TODO(synk): general non-trailing dim-pair swaps need a different block
    # layout; only the trailing-two-dims case (Transpose(1,2) on (B,N,C) tokens,
    # as used in dpt/vit.py) is implemented.
    raise NotImplementedError(
        "Pallas Transpose implemented for the trailing two dims only")


if __name__ == "__main__":
    key = jax.random.PRNGKey(0)
    k1, k2, k3 = jax.random.split(key, 3)

    # Case 1: ViT-token usage (B, N, C) -> (B, C, N); batch-blocked path.
    B, N, C = 2, 16, 32
    x = jax.random.normal(k1, (B, N, C), dtype=jnp.float32)
    out = jax.block_until_ready(transpose_module(x, 1, 2))
    assert out.shape == (B, C, N)
    assert jnp.array_equal(out, jnp.swapaxes(x, 1, 2)), "mismatch vs reference (case 1)"

    # Case 2: odd sizes + negative dims (boundary/masked-tail handling).
    x2 = jax.random.normal(k2, (2, 9, 200), dtype=jnp.float32)
    out2 = jax.block_until_ready(transpose_module(x2, -1, -2))
    assert out2.shape == (2, 200, 9)
    assert jnp.array_equal(out2, jnp.swapaxes(x2, 1, 2)), "mismatch vs reference (case 2)"

    # Case 3: plane-tiled path with a forced 2-way split (>=2 grid steps, balanced tiles).
    x3 = jax.random.normal(k3, (1, 640, 256), dtype=jnp.float32)
    out3 = jax.block_until_ready(transpose_module(x3, 1, 2))
    assert out3.shape == (1, 256, 640)
    assert jnp.array_equal(out3, jnp.swapaxes(x3, 1, 2)), "mismatch vs reference (case 3)"

    print("KERNEL_OK")
</pallas_src>

<mosaic_0001>
module attributes {stable_mosaic.version = 11 : i64} {
  func.func @_transpose_batched_kernel(%arg0: i32, %arg1: memref<1x16x32xf32, #tpu.memory_space<vmem>>, %arg2: memref<1x32x16xf32, #tpu.memory_space<vmem>>) attributes {dimension_semantics = [#tpu.dimension_semantics<parallel>], iteration_bounds = array<i64: 2>, scalar_prefetch = 0 : i64, scratch_operands = 0 : i64, tpu.core_type = #tpu.core_type<tc>, window_params = [{transform_indices = @transform_0, window_bounds = array<i64: 1, 16, 32>}, {transform_indices = @transform_1, window_bounds = array<i64: 1, 32, 16>}]} {
    %c0 = arith.constant 0 : index
    %c0_0 = arith.constant 0 : index
    %c0_1 = arith.constant 0 : index
    %0 = vector.load %arg1[%c0, %c0_0, %c0_1] : memref<1x16x32xf32, #tpu.memory_space<vmem>>, vector<1x16x32xf32>
    %1 = tpu.transpose %0, [0, 2, 1] : vector<1x16x32xf32> -> vector<1x32x16xf32>
    %c0_2 = arith.constant 0 : index
    %c0_3 = arith.constant 0 : index
    %c0_4 = arith.constant 0 : index
    %2 = vector.load %arg2[%c0_2, %c0_3, %c0_4] : memref<1x32x16xf32, #tpu.memory_space<vmem>>, vector<1x32x16xf32>
    tpu.vector_store %arg2[%c0_2, %c0_3, %c0_4], %1 {strides = array<i32>} : memref<1x32x16xf32, #tpu.memory_space<vmem>>, vector<1x32x16xf32>,
    return
  }
  func.func @transform_0(%arg0: i32) -> (i32, i32, i32) {
    %c0_i32 = arith.constant 0 : i32
    %c0_i32_0 = arith.constant 0 : i32
    %c0_i32_1 = arith.constant 0 : i32
    return %arg0, %c0_i32, %c0_i32_0 : i32, i32, i32
  }
  func.func @transform_1(%arg0: i32) -> (i32, i32, i32) {
    %c0_i32 = arith.constant 0 : i32
    %c0_i32_0 = arith.constant 0 : i32
    %c0_i32_1 = arith.constant 0 : i32
    return %arg0, %c0_i32, %c0_i32_0 : i32, i32, i32
  }
}

</mosaic_0001>

<llo_original>
// kernel: tpu_custom_call.1
$region0: #{tpu_custom_call.1}
  #allocation0 [shape = 'u32[]', space=smem, size = 0x4, offset = 0x4, fixed_abs, tag = 'smem constant byte address 0x4 - core index']
  #allocation1 [shape = 'u32[144,128]{1,0:T(1,128)}', space=vmem, size = 0x12000, scoped, tag = 'internal scratch']
  %s0 = inlined_call_operand.hbm [shape: f32[2,16,32], index: 0, kind: input, shape index: {}]
  %s1 = inlined_call_operand.vmem [shape: f32[2,32,16], index: 1, kind: output, shape index: {}]
  %s2 = sld [smem:[#allocation0]]
  $region41: #{tpu_custom_call.1} parent=0
    _
  %s4 = ssub.s32 1, %s2
  %s5 = scalar_select 0, %s4, %s2
  $region1: #{tpu_custom_call.1} parent=0
    #allocation2 [shape = 'u8[16384]{0}', space=vmem, size = 0x4000, scoped, tag = 'input window, operand 0']
    #allocation3 [shape = 's32[2]{0}', space=sflag, size = 0x8, scoped, tag = 'scoped memory for tpu_custom_call.1']
    %6 = vsyncpa [#allocation3], 0
    %s7 = scalar_lea.sflag [#allocation3], 1
    %8 = vsyncpa %s7, 0
    loop: start=0, step=1, limit=4
    $region2: #{tpu_custom_call.1} parent=1 // loop_pre_header
      _
    $region3: #{tpu_custom_call.1} parent=1 // loop_header
      %s10 = sphi 0, %s14
      %p11 = scmp.ge.s32.totalorder %s10, 4
      %s20 = sphi 0, %s22
      %s23 = sphi 0, %s20
      %s24 = sphi 0, %s23
      %s40 = sphi 0, %s24
      %s46 = sphi 0, %s48
      %s49 = sphi 0, %s46
      %s50 = sphi 0, %s49
      %s66 = sphi 0, %s50
    $region4: #{tpu_custom_call.1} parent=1 // loop_header_branch
      %13 = sbr.rel (%p11) target = $region8
    $region5: #{tpu_custom_call.1} parent=1 // loop_body
      %s15 = ssub.s32 %s10, 1
      %s16 = ssub.s32 %s10, 2
      %s17 = sadd.s32 %s10, 1
      %s18 = ssub.s32 %s10, %s17
      %p19 = scmp.eq.s32.totalorder %s18, 0
      %s21 = sadd.s32 %s20, 1
      %s22 = scalar_select %p19, %s20, %s21
      %p25 = pneg %p19
      %p26 = scmp.eq.s32.totalorder %s10, 1
      %p27 = por %p25, %p26
      %p28 = scmp.ne.s32.totalorder %s20, %s23
      %p29 = scmp.eq.s32.totalorder %s10, 0
      %p30 = por %p28, %p29
      %p31 = scmp.ne.s32.totalorder %s20, %s23
      %p32 = scmp.eq.s32.totalorder %s15, 1
      %p33 = por %p31, %p32
      %p34 = scmp.ne.s32.totalorder %s23, %s24
      %p35 = scmp.eq.s32.totalorder %s15, 0
      %p36 = por %p34, %p35
      %p37 = scmp.ne.s32.totalorder %s23, %s24
      %p38 = scmp.eq.s32.totalorder %s16, 1
      %p39 = por %p37, %p38
      %p41 = scmp.ne.s32.totalorder %s24, %s40
      %p42 = scmp.eq.s32.totalorder %s16, 0
      %p43 = por %p41, %p42
      %s44 = ssub.s32 %s10, %s17
      %p45 = scmp.eq.s32.totalorder %s44, 0
      %s47 = sadd.s32 %s46, 1
      %s48 = scalar_select %p45, %s46, %s47
      %p51 = pneg %p45
      %p52 = scmp.eq.s32.totalorder %s10, 1
      %p53 = por %p51, %p52
      %p54 = scmp.ne.s32.totalorder %s46, %s49
      %p55 = scmp.eq.s32.totalorder %s10, 0
      %p56 = por %p54, %p55
      %p57 = scmp.ne.s32.totalorder %s46, %s49
      %p58 = scmp.eq.s32.totalorder %s15, 1
      %p59 = por %p57, %p58
      %p60 = scmp.ne.s32.totalorder %s49, %s50
      %p61 = scmp.eq.s32.totalorder %s15, 0
      %p62 = por %p60, %p61
      %p63 = scmp.ne.s32.totalorder %s49, %s50
      %p64 = scmp.eq.s32.totalorder %s16, 1
      %p65 = por %p63, %p64
      %p67 = scmp.ne.s32.totalorder %s50, %s66
      %p68 = scmp.eq.s32.totalorder %s16, 0
      %p69 = por %p67, %p68
      %p70 = scmp.le.s32.totalorder 1, %s10
      %p71 = scmp.lt.s32.totalorder %s10, 3
      %p72 = pnand %p70, %p71
      %p73 = pneg %p72
      // Predicated region
      $region9: #{tpu_custom_call.1} parent=5 // pred_check
        _
      $region10: #{tpu_custom_call.1} parent=5 // pred_check_branch
        %75 = sbr.rel (%p72) target = $region12
      $region11: #{tpu_custom_call.1} parent=5 // pred_region
        %s76 = ssub.s32 %s10, 1
      $region12: #{tpu_custom_call.1} parent=5 // pred_fallthru
        _
      %p77 = scmp.lt.s32.totalorder %s10, 2
      // Predicated region
      $region13: #{tpu_custom_call.1} parent=5 // pred_check
        %p78 = pneg %p77
      $region14: #{tpu_custom_call.1} parent=5 // pred_check_branch
        %80 = sbr.rel (%p78) target = $region16
      $region15: #{tpu_custom_call.1} parent=5 // pred_region
        // Predicated region
        $region17: #{tpu_custom_call.1} parent=15 // pred_check
          %p81 = pneg %p30
        $region18: #{tpu_custom_call.1} parent=15 // pred_check_branch
          %83 = sbr.rel (%p81) target = $region20
        $region19: #{tpu_custom_call.1} parent=15 // pred_region
          %s84 = sand.u32 %s20, 1
          %s85 = scalar_lea.sflag [#allocation3], %s84
          %s86 = sand.u32 %s20, 1
          %s87 = smul.addr %s86, 16
          %s88 = scalar_lea.vmem [#allocation2], %s87
          %s90 = ssub.s32 256, 256
          %91 = vsyncadd %s85, %s90
          %s92 = smul.addr %s10, 2
          %s93 = smul.addr %s92, 128
          %s94 = scalar_lea.hbm %s0, %s93
          %s95 = sshll.u32 %s88, 4
          %s96 = int_to_ptr.vmem [resolvable:$true] %s95
          %101 = dma.hbm_to_vmem [thread:$0]  %s94, 256, %s96, %s85, 128, 128, 8
        $region20: #{tpu_custom_call.1} parent=15 // pred_fallthru
          _
      $region16: #{tpu_custom_call.1} parent=5 // pred_fallthru
        _
      %p102 = scmp.le.s32.totalorder 1, %s10
      %p103 = scmp.lt.s32.totalorder %s10, 3
      %p104 = pnand %p102, %p103
      %p105 = pneg %p104
      // Predicated region
      $region21: #{tpu_custom_call.1} parent=5 // pred_check
        _
      $region22: #{tpu_custom_call.1} parent=5 // pred_check_branch
        %107 = sbr.rel (%p104) target = $region24
      $region23: #{tpu_custom_call.1} parent=5 // pred_region
        %s108 = ssub.s32 %s10, 1
        %s109 = sand.u32 %s23, 1
        %s110 = scalar_lea.sflag [#allocation3], %s109
        %s111 = sand.u32 %s23, 1
        %s112 = smul.addr %s111, 16
        %s113 = scalar_lea.vmem [#allocation2], %s112
        // Predicated region
        $region25: #{tpu_custom_call.1} parent=23 // pred_check
          %p114 = pneg %p36
        $region26: #{tpu_custom_call.1} parent=23 // pred_check_branch
          %116 = sbr.rel (%p114) target = $region28
        $region27: #{tpu_custom_call.1} parent=23 // pred_region
          %117 = dma.done %s110, 256
        $region28: #{tpu_custom_call.1} parent=23 // pred_fallthru
          _
        %s118 = sand.u32 %s23, 1
        %s119 = scalar_lea.sflag [#allocation3], %s118
        %s120 = sand.u32 %s23, 1
        %s121 = smul.addr %s120, 16
        %s122 = scalar_lea.vmem [#allocation2], %s121
        %p123 = pneg %p36
        %p124 = pneg %p33
        %p125 = pneg %p62
        %p126 = pneg %p59
        %p127 = scmp.lt.s32.totalorder %s15, 1
        %s128 = scalar_select %p127, %s15, 1
        %s129 = smul.addr %s128, 4
        %s130 = smul.addr %s129, 8
        %s131 = scalar_lea.vmem %s1, %s130
        %p132 = scmp.lt.s32.totalorder %s15, 1
        %s133 = scalar_select %p132, %s15, 1
        %s134 = smul.addr %s133, 4
        %s135 = smul.addr %s134, 8
        %s136 = scalar_lea.vmem %s1, %s135
        %v137 = vld [vmem:[%s113] sm:$0xff]
        %v138 = vld [vmem:[%s113 + $0x8] sm:$0xff]
        %139 = vxpose.xlu0.b32.start [1/16] %v137, 128
        %140 = vxpose.xlu0.b32.cont [2/16] %v138, 128
        %141 = vxpose.xlu0.b32.cont [3/16] 0.0, 128
        %142 = vxpose.xlu0.b32.cont [4/16] 0.0, 128
        %143 = vxpose.xlu0.b32.cont [5/16] 0.0, 128
        %144 = vxpose.xlu0.b32.cont [6/16] 0.0, 128
        %145 = vxpose.xlu0.b32.cont [7/16] 0.0, 128
        %146 = vxpose.xlu0.b32.cont [8/16] 0.0, 128
        %147 = vxpose.xlu0.b32.cont [9/16] 0.0, 128
        %148 = vxpose.xlu0.b32.cont [10/16] 0.0, 128
        %149 = vxpose.xlu0.b32.cont [11/16] 0.0, 128
        %150 = vxpose.xlu0.b32.cont [12/16] 0.0, 128
        %151 = vxpose.xlu0.b32.cont [13/16] 0.0, 128
        %152 = vxpose.xlu0.b32.cont [14/16] 0.0, 128
        %153 = vxpose.xlu0.b32.cont [15/16] 0.0, 128
        %154 = vxpose.xlu0.b32.end [16/16] 0.0, 128
        %v155 = vpop.trf.xlu0
        %v156 = vpop.trf.xlu0
        %v157 = vpop.trf.xlu0
        %v158 = vpop.trf.xlu0
        %v159 = vpop.trf.xlu0
        %v160 = vpop.trf.xlu0
        %v161 = vpop.trf.xlu0
        %v162 = vpop.trf.xlu0
        %v163 = vpop.trf.xlu0
        %v164 = vpop.trf.xlu0
        %v165 = vpop.trf.xlu0
        %v166 = vpop.trf.xlu0
        %v167 = vpop.trf.xlu0
        %v168 = vpop.trf.xlu0
        %v169 = vpop.trf.xlu0
        %v170 = vpop.trf.xlu0
        %vm171 = vcmask 130048
        %172 = vst.msk [vmem:[%s136] sm:$0xff] %vm171, %v155
        %173 = vst.msk [vmem:[%s136 + $0x8] sm:$0xff] %vm171, %v156
        %174 = vst.msk [vmem:[%s136 + $0x10] sm:$0xff] %vm171, %v157
        %175 = vst.msk [vmem:[%s136 + $0x18] sm:$0xff] %vm171, %v158
        %p176 = scmp.lt.s32.totalorder %s15, 1
        %s177 = scalar_select %p176, %s15, 1
        %s178 = smul.addr %s177, 4
        %s179 = smul.addr %s178, 8
        %s180 = scalar_lea.vmem %s1, %s179
        // Predicated region
        $region29: #{tpu_custom_call.1} parent=23 // pred_check
          %p181 = pneg %p59
        $region30: #{tpu_custom_call.1} parent=23 // pred_check_branch
          %183 = sbr.rel (%p181) target = $region32
        $region31: #{tpu_custom_call.1} parent=23 // pred_region
          _
        $region32: #{tpu_custom_call.1} parent=23 // pred_fallthru
          _
      $region24: #{tpu_custom_call.1} parent=5 // pred_fallthru
        _
      %p184 = scmp.le.s32.totalorder 2, %s10
      // Predicated region
      $region33: #{tpu_custom_call.1} parent=5 // pred_check
        %p185 = pneg %p184
      $region34: #{tpu_custom_call.1} parent=5 // pred_check_branch
        %187 = sbr.rel (%p185) target = $region36
      $region35: #{tpu_custom_call.1} parent=5 // pred_region
        %s188 = ssub.s32 %s10, 2
        // Predicated region
        $region37: #{tpu_custom_call.1} parent=35 // pred_check
          %p189 = pneg %p65
        $region38: #{tpu_custom_call.1} parent=35 // pred_check_branch
          %191 = sbr.rel (%p189) target = $region40
        $region39: #{tpu_custom_call.1} parent=35 // pred_region
          %p192 = scmp.lt.s32.totalorder %s16, 1
          %s193 = scalar_select %p192, %s16, 1
          %s194 = smul.addr %s193, 4
          %s195 = smul.addr %s194, 8
          %s196 = scalar_lea.vmem %s1, %s195
        $region40: #{tpu_custom_call.1} parent=35 // pred_fallthru
          _
      $region36: #{tpu_custom_call.1} parent=5 // pred_fallthru
        _
    $region6: #{tpu_custom_call.1} parent=1 // loop_footer
      %s14 = sadd.s32 1, %s10
    $region7: #{tpu_custom_call.1} parent=1 // loop_footer_branch
      %9 = sbr.rel target = $region3
    $region8: #{tpu_custom_call.1} parent=1 // loop_exit
      _
    %197 = vsyncpa [#allocation3], 1
    %s198 = scalar_lea.sflag [#allocation3], 1
    %199 = vsyncpa %s198, 1

</llo_original>
